<compile_context>
chip_gen: v7x
topology: tpu7x:2x2x1
jax: 0.10.0
libtpu: 0.0.40
codegen_flags: <defaults>
</compile_context>

<pallas_src>
import functools
import math

import jax
import jax.numpy as jnp
from jax.experimental import pallas as pl
from jax.experimental.pallas import tpu as pltpu


# ----------------------------------------------------------------------------
# Pallas kernel
# ----------------------------------------------------------------------------

def _adain_kernel(s_ref, wg_ref, wb_ref, bg_ref, bb_ref, x_ref, o_ref, *, eps):
    # s_ref : (1, 1, S)   style row for this batch element
    # wg_ref: (tc, S)     gamma rows of the fc weight (W[:C] slice)
    # wb_ref: (tc, S)     beta  rows of the fc weight (W[C:] slice)
    # bg_ref: (tc, 1)     gamma bias column
    # bb_ref: (tc, 1)     beta  bias column
    # x_ref : (1, tc, L)  activation tile, L = H*W (full spatial extent)
    # o_ref : (1, tc, L)
    s = s_ref[0]                                                      # (1, S)

    # Fused fc(s) for this channel tile: broadcast-mul + lane reduce -> (tc, 1).
    gamma = jnp.sum(wg_ref[...] * s, axis=1, keepdims=True) + bg_ref[...]
    beta = jnp.sum(wb_ref[...] * s, axis=1, keepdims=True) + bb_ref[...]

    x = x_ref[0]                                                      # (tc, L)
    mean = jnp.mean(x, axis=1, keepdims=True)                         # (tc, 1)
    xc = x - mean
    var = jnp.mean(xc * xc, axis=1, keepdims=True)                    # biased var
    xn = xc * jax.lax.rsqrt(var + eps)
    o_ref[0] = ((1.0 + gamma) * xn + beta).astype(o_ref.dtype)


def _pick_channel_tile(C, L, itemsize, budget_bytes=4 * 1024 * 1024):
    """Largest multiple-of-8 divisor of C whose double-buffered x+out blocks fit."""
    if C % 8 != 0:
        return C                      # block == full channel dim is always legal
    tc = 8
    for cand in range(8, C + 1, 8):
        if C % cand == 0 and 4 * cand * L * itemsize <= budget_bytes:
            tc = cand
    return tc


# ----------------------------------------------------------------------------
# Wrapper
# ----------------------------------------------------------------------------

@functools.partial(jax.jit, static_argnames=("eps",))
def adain_forward(x, s, w, b, eps=1e-5):
    """(1 + gamma) * InstanceNorm2d(x) + beta with [gamma | beta] = s @ w.T + b.

    x: (B, C, H, W) f32, s: (B, S) f32, w: (2C, S) f32, b: (2C,) f32.
    """
    B, C, H, W = x.shape
    S = s.shape[1]
    L = H * W

    x3 = x.reshape(B, C, L)
    s3 = s.reshape(B, 1, S)
    wg, wb = w[:C], w[C:]                                   # (C, S) each
    bg, bb = b[:C].reshape(C, 1), b[C:].reshape(C, 1)

    tc = _pick_channel_tile(C, L, x.dtype.itemsize)
    grid = (B, C // tc)

    flops = B * C * L * 7 + 4 * B * C * S                   # norm/affine + fused fc
    bytes_accessed = (2 * B * C * L + 2 * C * S + 2 * C + B * S) * x.dtype.itemsize

    out = pl.pallas_call(
        functools.partial(_adain_kernel, eps=eps),
        out_shape=jax.ShapeDtypeStruct((B, C, L), x.dtype),
        grid=grid,
        in_specs=[
            pl.BlockSpec((1, 1, S), lambda bi, ci: (bi, 0, 0)),
            pl.BlockSpec((tc, S), lambda bi, ci: (ci, 0)),
            pl.BlockSpec((tc, S), lambda bi, ci: (ci, 0)),
            pl.BlockSpec((tc, 1), lambda bi, ci: (ci, 0)),
            pl.BlockSpec((tc, 1), lambda bi, ci: (ci, 0)),
            pl.BlockSpec((1, tc, L), lambda bi, ci: (bi, ci, 0)),
        ],
        out_specs=pl.BlockSpec((1, tc, L), lambda bi, ci: (bi, ci, 0)),
        compiler_params=pltpu.CompilerParams(
            dimension_semantics=("parallel", "parallel"),
            vmem_limit_bytes=32 * 1024 * 1024,
        ),
        cost_estimate=pl.CostEstimate(
            flops=flops, transcendentals=B * C, bytes_accessed=bytes_accessed),
    )(s3, wg, wb, bg, bb, x3)
    return out.reshape(B, C, H, W)


# ----------------------------------------------------------------------------
# Pure-JAX reference (same reduction style as the kernel, f32 everywhere)
# ----------------------------------------------------------------------------

def adain_reference(x, s, w, b, eps=1e-5):
    B, C, H, W = x.shape
    h = jnp.sum(s[:, None, :] * w[None, :, :], axis=-1) + b           # (B, 2C)
    gamma = h[:, :C].reshape(B, C, 1, 1)
    beta = h[:, C:].reshape(B, C, 1, 1)
    mean = jnp.mean(x, axis=(2, 3), keepdims=True)
    var = jnp.mean(jnp.square(x - mean), axis=(2, 3), keepdims=True)
    xn = (x - mean) * jax.lax.rsqrt(var + eps)
    return (1.0 + gamma) * xn + beta


# ----------------------------------------------------------------------------
# Main
# ----------------------------------------------------------------------------

if __name__ == "__main__":
    B, C, H, W, S = 2, 64, 16, 16, 64        # num_features=64, style_dim=64

    key = jax.random.PRNGKey(0)
    kx, ks_, kw, kb = jax.random.split(key, 4)
    x = jax.random.normal(kx, (B, C, H, W), jnp.float32)
    s = jax.random.normal(ks_, (B, S), jnp.float32)
    # nn.Linear default init: U(-1/sqrt(fan_in), 1/sqrt(fan_in))
    bound = 1.0 / math.sqrt(S)
    w = jax.random.uniform(kw, (2 * C, S), jnp.float32, -bound, bound)
    b = jax.random.uniform(kb, (2 * C,), jnp.float32, -bound, bound)

    out = adain_forward(x, s, w, b)
    out = jax.block_until_ready(out)

    ref = adain_reference(x, s, w, b)
    assert out.shape == (B, C, H, W)
    assert bool(jnp.all(jnp.isfinite(out)))
    err = float(jnp.max(jnp.abs(out - ref)))
    assert err < 1e-3, f"max abs error {err}"
    print("KERNEL_OK")
</pallas_src>

<mosaic_0001>
module attributes {stable_mosaic.version = 11 : i64} {
  func.func @_adain_kernel(%arg0: i32, %arg1: i32, %arg2: memref<1x1x64xf32, #tpu.memory_space<vmem>>, %arg3: memref<64x64xf32, #tpu.memory_space<vmem>>, %arg4: memref<64x64xf32, #tpu.memory_space<vmem>>, %arg5: memref<64x1xf32, #tpu.memory_space<vmem>>, %arg6: memref<64x1xf32, #tpu.memory_space<vmem>>, %arg7: memref<1x64x256xf32, #tpu.memory_space<vmem>>, %arg8: memref<1x64x256xf32, #tpu.memory_space<vmem>>) attributes {dimension_semantics = [#tpu.dimension_semantics<parallel>, #tpu.dimension_semantics<parallel>], iteration_bounds = array<i64: 2, 1>, scalar_prefetch = 0 : i64, scratch_operands = 0 : i64, tpu.core_type = #tpu.core_type<tc>, window_params = [{transform_indices = @transform_0, window_bounds = array<i64: 1, 1, 64>}, {transform_indices = @transform_1, window_bounds = array<i64: 64, 64>}, {transform_indices = @transform_2, window_bounds = array<i64: 64, 64>}, {transform_indices = @transform_3, window_bounds = array<i64: 64, 1>}, {transform_indices = @transform_4, window_bounds = array<i64: 64, 1>}, {transform_indices = @transform_5, window_bounds = array<i64: 1, 64, 256>}, {transform_indices = @transform_6, window_bounds = array<i64: 1, 64, 256>}]} {
    %c0 = arith.constant 0 : index
    %c0_0 = arith.constant 0 : index
    %c0_1 = arith.constant 0 : index
    %0 = vector.load %arg2[%c0, %c0_0, %c0_1] : memref<1x1x64xf32, #tpu.memory_space<vmem>>, vector<1x1x64xf32>
    %1 = vector.shape_cast %0 : vector<1x1x64xf32> to vector<1x64xf32>
    %c0_2 = arith.constant 0 : index
    %c0_3 = arith.constant 0 : index
    %2 = vector.load %arg3[%c0_2, %c0_3] : memref<64x64xf32, #tpu.memory_space<vmem>>, vector<64x64xf32>
    %3 = vector.broadcast %1 : vector<1x64xf32> to vector<64x64xf32>
    %4 = arith.mulf %2, %3 : vector<64x64xf32>
    %cst = arith.constant dense<0.000000e+00> : vector<64xf32>
    %5 = vector.multi_reduction <add>, %4, %cst [1] : vector<64x64xf32> to vector<64xf32>
    %6 = vector.shape_cast %5 : vector<64xf32> to vector<64x1xf32>
    %c0_4 = arith.constant 0 : index
    %c0_5 = arith.constant 0 : index
    %7 = vector.load %arg5[%c0_4, %c0_5] : memref<64x1xf32, #tpu.memory_space<vmem>>, vector<64x1xf32>
    %8 = arith.addf %6, %7 : vector<64x1xf32>
    %c0_6 = arith.constant 0 : index
    %c0_7 = arith.constant 0 : index
    %9 = vector.load %arg4[%c0_6, %c0_7] : memref<64x64xf32, #tpu.memory_space<vmem>>, vector<64x64xf32>
    %10 = vector.broadcast %1 : vector<1x64xf32> to vector<64x64xf32>
    %11 = arith.mulf %9, %10 : vector<64x64xf32>
    %cst_8 = arith.constant dense<0.000000e+00> : vector<64xf32>
    %12 = vector.multi_reduction <add>, %11, %cst_8 [1] : vector<64x64xf32> to vector<64xf32>
    %13 = vector.shape_cast %12 : vector<64xf32> to vector<64x1xf32>
    %c0_9 = arith.constant 0 : index
    %c0_10 = arith.constant 0 : index
    %14 = vector.load %arg6[%c0_9, %c0_10] : memref<64x1xf32, #tpu.memory_space<vmem>>, vector<64x1xf32>
    %15 = arith.addf %13, %14 : vector<64x1xf32>
    %c0_11 = arith.constant 0 : index
    %c0_12 = arith.constant 0 : index
    %c0_13 = arith.constant 0 : index
    %16 = vector.load %arg7[%c0_11, %c0_12, %c0_13] : memref<1x64x256xf32, #tpu.memory_space<vmem>>, vector<1x64x256xf32>
    %17 = vector.shape_cast %16 : vector<1x64x256xf32> to vector<64x256xf32>
    %cst_14 = arith.constant dense<0.000000e+00> : vector<64xf32>
    %18 = vector.multi_reduction <add>, %17, %cst_14 [1] : vector<64x256xf32> to vector<64xf32>
    %19 = vector.shape_cast %18 : vector<64xf32> to vector<64x1xf32>
    %cst_15 = arith.constant 2.560000e+02 : f32
    %20 = vector.broadcast %cst_15 : f32 to vector<64x1xf32>
    %21 = arith.divf %19, %20 : vector<64x1xf32>
    %22 = vector.broadcast %21 : vector<64x1xf32> to vector<64x256xf32>
    %23 = arith.subf %17, %22 : vector<64x256xf32>
    %24 = arith.mulf %23, %23 : vector<64x256xf32>
    %cst_16 = arith.constant dense<0.000000e+00> : vector<64xf32>
    %25 = vector.multi_reduction <add>, %24, %cst_16 [1] : vector<64x256xf32> to vector<64xf32>
    %26 = vector.shape_cast %25 : vector<64xf32> to vector<64x1xf32>
    %cst_17 = arith.constant 2.560000e+02 : f32
    %27 = vector.broadcast %cst_17 : f32 to vector<64x1xf32>
    %28 = arith.divf %26, %27 : vector<64x1xf32>
    %cst_18 = arith.constant 9.99999974E-6 : f32
    %29 = vector.broadcast %cst_18 : f32 to vector<64x1xf32>
    %30 = arith.addf %28, %29 : vector<64x1xf32>
    %31 = math.rsqrt %30 : vector<64x1xf32>
    %32 = vector.broadcast %31 : vector<64x1xf32> to vector<64x256xf32>
    %33 = arith.mulf %23, %32 : vector<64x256xf32>
    %cst_19 = arith.constant 1.000000e+00 : f32
    %34 = vector.broadcast %cst_19 : f32 to vector<64x1xf32>
    %35 = arith.addf %34, %8 : vector<64x1xf32>
    %36 = vector.broadcast %35 : vector<64x1xf32> to vector<64x256xf32>
    %37 = arith.mulf %36, %33 : vector<64x256xf32>
    %38 = vector.broadcast %15 : vector<64x1xf32> to vector<64x256xf32>
    %39 = arith.addf %37, %38 : vector<64x256xf32>
    %c0_20 = arith.constant 0 : index
    %c0_21 = arith.constant 0 : index
    %c0_22 = arith.constant 0 : index
    %40 = vector.load %arg8[%c0_20, %c0_21, %c0_22] : memref<1x64x256xf32, #tpu.memory_space<vmem>>, vector<1x64x256xf32>
    %41 = vector.shape_cast %40 : vector<1x64x256xf32> to vector<64x256xf32>
    %42 = vector.shape_cast %39 : vector<64x256xf32> to vector<1x64x256xf32>
    tpu.vector_store %arg8[%c0_20, %c0_21, %c0_22], %42 {strides = array<i32>} : memref<1x64x256xf32, #tpu.memory_space<vmem>>, vector<1x64x256xf32>,
    return
  }
  func.func @transform_0(%arg0: i32, %arg1: i32) -> (i32, i32, i32) {
    %c0_i32 = arith.constant 0 : i32
    %c0_i32_0 = arith.constant 0 : i32
    %c0_i32_1 = arith.constant 0 : i32
    return %arg0, %c0_i32, %c0_i32_0 : i32, i32, i32
  }
  func.func @transform_1(%arg0: i32, %arg1: i32) -> (i32, i32) {
    %c0_i32 = arith.constant 0 : i32
    %c0_i32_0 = arith.constant 0 : i32
    return %arg1, %c0_i32 : i32, i32
  }
  func.func @transform_2(%arg0: i32, %arg1: i32) -> (i32, i32) {
    %c0_i32 = arith.constant 0 : i32
    %c0_i32_0 = arith.constant 0 : i32
    return %arg1, %c0_i32 : i32, i32
  }
  func.func @transform_3(%arg0: i32, %arg1: i32) -> (i32, i32) {
    %c0_i32 = arith.constant 0 : i32
    %c0_i32_0 = arith.constant 0 : i32
    return %arg1, %c0_i32 : i32, i32
  }
  func.func @transform_4(%arg0: i32, %arg1: i32) -> (i32, i32) {
    %c0_i32 = arith.constant 0 : i32
    %c0_i32_0 = arith.constant 0 : i32
    return %arg1, %c0_i32 : i32, i32
  }
  func.func @transform_5(%arg0: i32, %arg1: i32) -> (i32, i32, i32) {
    %c0_i32 = arith.constant 0 : i32
    %c0_i32_0 = arith.constant 0 : i32
    return %arg0, %arg1, %c0_i32 : i32, i32, i32
  }
  func.func @transform_6(%arg0: i32, %arg1: i32) -> (i32, i32, i32) {
    %c0_i32 = arith.constant 0 : i32
    %c0_i32_0 = arith.constant 0 : i32
    return %arg0, %arg1, %c0_i32 : i32, i32, i32
  }
}

</mosaic_0001>

<llo_original>
// kernel: adain_forward.1
$region0: #{adain_forward.1}
  #allocation0 [shape = 'u32[]', space=smem, size = 0x4, offset = 0x4, fixed_abs, tag = 'smem constant byte address 0x4 - core index']
  #allocation1 [shape = 'u32[144,128]{1,0:T(1,128)}', space=vmem, size = 0x12000, scoped, tag = 'internal scratch']
  %s0 = inlined_call_operand.vmem [shape: f32[2,1,64], index: 0, kind: input, shape index: {}]
  %s1 = inlined_call_operand.vmem [shape: f32[64,64], index: 1, kind: input, shape index: {}]
  %s2 = inlined_call_operand.vmem [shape: f32[64,64], index: 2, kind: input, shape index: {}]
  %s3 = inlined_call_operand.vmem [shape: f32[64,1], index: 3, kind: input, shape index: {}]
  %s4 = inlined_call_operand.vmem [shape: f32[64,1], index: 4, kind: input, shape index: {}]
  %s5 = inlined_call_operand.vmem [shape: f32[2,64,256], index: 5, kind: input, shape index: {}]
  %s6 = inlined_call_operand.vmem [shape: f32[2,64,256], index: 6, kind: output, shape index: {}]
  %s7 = sld [smem:[#allocation0]]
  $region57: #{adain_forward.1} parent=0
    _
  %s9 = ssub.s32 1, %s7
  %s10 = scalar_select 0, %s9, %s7
  loop: start=0, step=1, limit=4
  $region2: #{adain_forward.1} parent=0 // loop_pre_header
    _
  $region3: #{adain_forward.1} parent=0 // loop_header
    %s12 = sphi 0, %s16
    %p13 = scmp.ge.s32.totalorder %s12, 4
    %s19 = sphi 0, %s31
    %s20 = sphi 0, %s27
    %s21 = sphi 0, %s19
    %s22 = sphi 0, %s20
    %s23 = sphi 0, %s21
    %s24 = sphi 0, %s22
    %s34 = sphi 0, %s36
    %s37 = sphi 0, %s34
    %s38 = sphi 0, %s37
    %s54 = sphi 0, %s38
    %s60 = sphi 0, %s62
    %s63 = sphi 0, %s60
    %s64 = sphi 0, %s63
    %s80 = sphi 0, %s64
    %s86 = sphi 0, %s88
    %s89 = sphi 0, %s86
    %s90 = sphi 0, %s89
    %s106 = sphi 0, %s90
    %s112 = sphi 0, %s114
    %s115 = sphi 0, %s112
    %s116 = sphi 0, %s115
    %s132 = sphi 0, %s116
    %s138 = sphi 0, %s140
    %s141 = sphi 0, %s138
    %s142 = sphi 0, %s141
    %s158 = sphi 0, %s142
    %s166 = sphi 0, %s168
    %s169 = sphi 0, %s166
    %s170 = sphi 0, %s169
    %s186 = sphi 0, %s170
    %s194 = sphi 0, %s196
    %s197 = sphi 0, %s194
    %s198 = sphi 0, %s197
    %s214 = sphi 0, %s198
  $region4: #{adain_forward.1} parent=0 // loop_header_branch
    %15 = sbr.rel (%p13) target = $region8
  $region5: #{adain_forward.1} parent=0 // loop_body
    %s17 = ssub.s32 %s12, 1
    %s18 = ssub.s32 %s12, 2
    %s25 = sadd.s32 1, %s20
    %p26 = scmp.ge.s32.totalorder %s25, 1
    %s27 = scalar_select %p26, 0, %s25
    %s28 = sadd.s32 1, %s19
    %s29 = scalar_select %p26, %s28, %s19
    %p30 = scmp.ge.s32.totalorder %s29, 2
    %s31 = scalar_select %p30, 0, %s29
    %s32 = ssub.s32 %s19, %s31
    %p33 = scmp.eq.s32.totalorder %s32, 0
    %s35 = sadd.s32 %s34, 1
    %s36 = scalar_select %p33, %s34, %s35
    %p39 = pneg %p33
    %p40 = scmp.eq.s32.totalorder %s12, 1
    %p41 = por %p39, %p40
    %p42 = scmp.ne.s32.totalorder %s34, %s37
    %p43 = scmp.eq.s32.totalorder %s12, 0
    %p44 = por %p42, %p43
    %p45 = scmp.ne.s32.totalorder %s34, %s37
    %p46 = scmp.eq.s32.totalorder %s17, 1
    %p47 = por %p45, %p46
    %p48 = scmp.ne.s32.totalorder %s37, %s38
    %p49 = scmp.eq.s32.totalorder %s17, 0
    %p50 = por %p48, %p49
    %p51 = scmp.ne.s32.totalorder %s37, %s38
    %p52 = scmp.eq.s32.totalorder %s18, 1
    %p53 = por %p51, %p52
    %p55 = scmp.ne.s32.totalorder %s38, %s54
    %p56 = scmp.eq.s32.totalorder %s18, 0
    %p57 = por %p55, %p56
    %s58 = ssub.s32 %s20, %s27
    %p59 = scmp.eq.s32.totalorder %s58, 0
    %s61 = sadd.s32 %s60, 1
    %s62 = scalar_select %p59, %s60, %s61
    %p65 = pneg %p59
    %p66 = scmp.eq.s32.totalorder %s12, 1
    %p67 = por %p65, %p66
    %p68 = scmp.ne.s32.totalorder %s60, %s63
    %p69 = scmp.eq.s32.totalorder %s12, 0
    %p70 = por %p68, %p69
    %p71 = scmp.ne.s32.totalorder %s60, %s63
    %p72 = scmp.eq.s32.totalorder %s17, 1
    %p73 = por %p71, %p72
    %p74 = scmp.ne.s32.totalorder %s63, %s64
    %p75 = scmp.eq.s32.totalorder %s17, 0
    %p76 = por %p74, %p75
    %p77 = scmp.ne.s32.totalorder %s63, %s64
    %p78 = scmp.eq.s32.totalorder %s18, 1
    %p79 = por %p77, %p78
    %p81 = scmp.ne.s32.totalorder %s64, %s80
    %p82 = scmp.eq.s32.totalorder %s18, 0
    %p83 = por %p81, %p82
    %s84 = ssub.s32 %s20, %s27
    %p85 = scmp.eq.s32.totalorder %s84, 0
    %s87 = sadd.s32 %s86, 1
    %s88 = scalar_select %p85, %s86, %s87
    %p91 = pneg %p85
    %p92 = scmp.eq.s32.totalorder %s12, 1
    %p93 = por %p91, %p92
    %p94 = scmp.ne.s32.totalorder %s86, %s89
    %p95 = scmp.eq.s32.totalorder %s12, 0
    %p96 = por %p94, %p95
    %p97 = scmp.ne.s32.totalorder %s86, %s89
    %p98 = scmp.eq.s32.totalorder %s17, 1
    %p99 = por %p97, %p98
    %p100 = scmp.ne.s32.totalorder %s89, %s90
    %p101 = scmp.eq.s32.totalorder %s17, 0
    %p102 = por %p100, %p101
    %p103 = scmp.ne.s32.totalorder %s89, %s90
    %p104 = scmp.eq.s32.totalorder %s18, 1
    %p105 = por %p103, %p104
    %p107 = scmp.ne.s32.totalorder %s90, %s106
    %p108 = scmp.eq.s32.totalorder %s18, 0
    %p109 = por %p107, %p108
    %s110 = ssub.s32 %s20, %s27
    %p111 = scmp.eq.s32.totalorder %s110, 0
    %s113 = sadd.s32 %s112, 1
    %s114 = scalar_select %p111, %s112, %s113
    %p117 = pneg %p111
    %p118 = scmp.eq.s32.totalorder %s12, 1
    %p119 = por %p117, %p118
    %p120 = scmp.ne.s32.totalorder %s112, %s115
    %p121 = scmp.eq.s32.totalorder %s12, 0
    %p122 = por %p120, %p121
    %p123 = scmp.ne.s32.totalorder %s112, %s115
    %p124 = scmp.eq.s32.totalorder %s17, 1
    %p125 = por %p123, %p124
    %p126 = scmp.ne.s32.totalorder %s115, %s116
    %p127 = scmp.eq.s32.totalorder %s17, 0
    %p128 = por %p126, %p127
    %p129 = scmp.ne.s32.totalorder %s115, %s116
    %p130 = scmp.eq.s32.totalorder %s18, 1
    %p131 = por %p129, %p130
    %p133 = scmp.ne.s32.totalorder %s116, %s132
    %p134 = scmp.eq.s32.totalorder %s18, 0
    %p135 = por %p133, %p134
    %s136 = ssub.s32 %s20, %s27
    %p137 = scmp.eq.s32.totalorder %s136, 0
    %s139 = sadd.s32 %s138, 1
    %s140 = scalar_select %p137, %s138, %s139
    %p143 = pneg %p137
    %p144 = scmp.eq.s32.totalorder %s12, 1
    %p145 = por %p143, %p144
    %p146 = scmp.ne.s32.totalorder %s138, %s141
    %p147 = scmp.eq.s32.totalorder %s12, 0
    %p148 = por %p146, %p147
    %p149 = scmp.ne.s32.totalorder %s138, %s141
    %p150 = scmp.eq.s32.totalorder %s17, 1
    %p151 = por %p149, %p150
    %p152 = scmp.ne.s32.totalorder %s141, %s142
    %p153 = scmp.eq.s32.totalorder %s17, 0
    %p154 = por %p152, %p153
    %p155 = scmp.ne.s32.totalorder %s141, %s142
    %p156 = scmp.eq.s32.totalorder %s18, 1
    %p157 = por %p155, %p156
    %p159 = scmp.ne.s32.totalorder %s142, %s158
    %p160 = scmp.eq.s32.totalorder %s18, 0
    %p161 = por %p159, %p160
    %s162 = ssub.s32 %s19, %s31
    %s163 = ssub.s32 %s20, %s27
    %s164 = sor.u32 %s162, %s163
    %p165 = scmp.eq.s32.totalorder %s164, 0
    %s167 = sadd.s32 %s166, 1
    %s168 = scalar_select %p165, %s166, %s167
    %p171 = pneg %p165
    %p172 = scmp.eq.s32.totalorder %s12, 1
    %p173 = por %p171, %p172
    %p174 = scmp.ne.s32.totalorder %s166, %s169
    %p175 = scmp.eq.s32.totalorder %s12, 0
    %p176 = por %p174, %p175
    %p177 = scmp.ne.s32.totalorder %s166, %s169
    %p178 = scmp.eq.s32.totalorder %s17, 1
    %p179 = por %p177, %p178
    %p180 = scmp.ne.s32.totalorder %s169, %s170
    %p181 = scmp.eq.s32.totalorder %s17, 0
    %p182 = por %p180, %p181
    %p183 = scmp.ne.s32.totalorder %s169, %s170
    %p184 = scmp.eq.s32.totalorder %s18, 1
    %p185 = por %p183, %p184
    %p187 = scmp.ne.s32.totalorder %s170, %s186
    %p188 = scmp.eq.s32.totalorder %s18, 0
    %p189 = por %p187, %p188
    %s190 = ssub.s32 %s19, %s31
    %s191 = ssub.s32 %s20, %s27
    %s192 = sor.u32 %s190, %s191
    %p193 = scmp.eq.s32.totalorder %s192, 0
    %s195 = sadd.s32 %s194, 1
    %s196 = scalar_select %p193, %s194, %s195
    %p199 = pneg %p193
    %p200 = scmp.eq.s32.totalorder %s12, 1
    %p201 = por %p199, %p200
    %p202 = scmp.ne.s32.totalorder %s194, %s197
    %p203 = scmp.eq.s32.totalorder %s12, 0
    %p204 = por %p202, %p203
    %p205 = scmp.ne.s32.totalorder %s194, %s197
    %p206 = scmp.eq.s32.totalorder %s17, 1
    %p207 = por %p205, %p206
    %p208 = scmp.ne.s32.totalorder %s197, %s198
    %p209 = scmp.eq.s32.totalorder %s17, 0
    %p210 = por %p208, %p209
    %p211 = scmp.ne.s32.totalorder %s197, %s198
    %p212 = scmp.eq.s32.totalorder %s18, 1
    %p213 = por %p211, %p212
    %p215 = scmp.ne.s32.totalorder %s198, %s214
    %p216 = scmp.eq.s32.totalorder %s18, 0
    %p217 = por %p215, %p216
    %p218 = scmp.le.s32.totalorder 1, %s12
    %p219 = scmp.lt.s32.totalorder %s12, 3
    %p220 = pnand %p218, %p219
    %p221 = pneg %p220
    // Predicated region
    $region9: #{adain_forward.1} parent=5 // pred_check
      _
    $region10: #{adain_forward.1} parent=5 // pred_check_branch
      %223 = sbr.rel (%p220) target = $region12
    $region11: #{adain_forward.1} parent=5 // pred_region
      %s224 = ssub.s32 %s12, 1
      // Predicated region
      $region13: #{adain_forward.1} parent=11 // pred_check
        %p225 = pneg %p76
      $region14: #{adain_forward.1} parent=11 // pred_check_branch
        %227 = sbr.rel (%p225) target = $region16
      $region15: #{adain_forward.1} parent=11 // pred_region
        %s228 = smul.u32 8, %s22
        %p229 = scmp.lt.s32.totalorder %s228, 7
        %s230 = scalar_select %p229, %s228, 7
        %s231 = smul.addr %s230, 8
        %s232 = scalar_lea.vmem %s1, %s231
        %s233 = smul.u32 8, %s22
      $region16: #{adain_forward.1} parent=11 // pred_fallthru
        _
      // Predicated region
      $region17: #{adain_forward.1} parent=11 // pred_check
        %p234 = pneg %p102
      $region18: #{adain_forward.1} parent=11 // pred_check_branch
        %236 = sbr.rel (%p234) target = $region20
      $region19: #{adain_forward.1} parent=11 // pred_region
        %s237 = smul.u32 8, %s22
        %p238 = scmp.lt.s32.totalorder %s237, 7
        %s239 = scalar_select %p238, %s237, 7
        %s240 = smul.addr %s239, 8
        %s241 = scalar_lea.vmem %s2, %s240
        %s242 = smul.u32 8, %s22
      $region20: #{adain_forward.1} parent=11 // pred_fallthru
        _
      // Predicated region
      $region21: #{adain_forward.1} parent=11 // pred_check
        %p243 = pneg %p128
      $region22: #{adain_forward.1} parent=11 // pred_check_branch
        %245 = sbr.rel (%p243) target = $region24
      $region23: #{adain_forward.1} parent=11 // pred_region
        %s246 = smul.u32 8, %s22
        %p247 = scmp.lt.s32.totalorder %s246, 7
        %s248 = scalar_select %p247, %s246, 7
        %s249 = smul.addr %s248, 8
        %s250 = scalar_lea.vmem %s3, %s249
        %s251 = smul.u32 8, %s22
      $region24: #{adain_forward.1} parent=11 // pred_fallthru
        _
      // Predicated region
      $region25: #{adain_forward.1} parent=11 // pred_check
        %p252 = pneg %p154
      $region26: #{adain_forward.1} parent=11 // pred_check_branch
        %254 = sbr.rel (%p252) target = $region28
      $region27: #{adain_forward.1} parent=11 // pred_region
        %s255 = smul.u32 8, %s22
        %p256 = scmp.lt.s32.totalorder %s255, 7
        %s257 = scalar_select %p256, %s255, 7
        %s258 = smul.addr %s257, 8
        %s259 = scalar_lea.vmem %s4, %s258
        %s260 = smul.u32 8, %s22
      $region28: #{adain_forward.1} parent=11 // pred_fallthru
        _
    $region12: #{adain_forward.1} parent=5 // pred_fallthru
      _
    %p261 = scmp.lt.s32.totalorder %s12, 2
    // Predicated region
    $region29: #{adain_forward.1} parent=5 // pred_check
      %p262 = pneg %p261
    $region30: #{adain_forward.1} parent=5 // pred_check_branch
      %264 = sbr.rel (%p262) target = $region32
    $region31: #{adain_forward.1} parent=5 // pred_region
      // Predicated region
      $region33: #{adain_forward.1} parent=31 // pred_check
        %p265 = pneg %p44
      $region34: #{adain_forward.1} parent=31 // pred_check_branch
        %267 = sbr.rel (%p265) target = $region36
      $region35: #{adain_forward.1} parent=31 // pred_region
        %p268 = scmp.lt.s32.totalorder %s19, 1
        %s269 = scalar_select %p268, %s19, 1
        %s270 = scalar_lea.vmem %s0, %s269
      $region36: #{adain_forward.1} parent=31 // pred_fallthru
        _
      // Predicated region
      $region37: #{adain_forward.1} parent=31 // pred_check
        %p271 = pneg %p176
      $region38: #{adain_forward.1} parent=31 // pred_check_branch
        %273 = sbr.rel (%p271) target = $region40
      $region39: #{adain_forward.1} parent=31 // pred_region
        %s274 = smul.u32 8, %s20
        %p275 = scmp.lt.s32.totalorder %s19, 1
        %s276 = scalar_select %p275, %s19, 1
        %p277 = scmp.lt.s32.totalorder %s274, 7
        %s278 = scalar_select %p277, %s274, 7
        %s279 = smul.addr %s278, 2
        %s280 = smul.addr %s276, 16
        %s281 = sadd.s32 %s279, %s280
        %s282 = smul.addr %s281, 8
        %s283 = scalar_lea.vmem %s5, %s282
        %s284 = smul.u32 8, %s20
      $region40: #{adain_forward.1} parent=31 // pred_fallthru
        _
    $region32: #{adain_forward.1} parent=5 // pred_fallthru
      _
    %p285 = scmp.le.s32.totalorder 1, %s12
    %p286 = scmp.lt.s32.totalorder %s12, 3
    %p287 = pnand %p285, %p286
    %p288 = pneg %p287
    // Predicated region
    $region41: #{adain_forward.1} parent=5 // pred_check
      _
    $region42: #{adain_forward.1} parent=5 // pred_check_branch
      %290 = sbr.rel (%p287) target = $region44
    $region43: #{adain_forward.1} parent=5 // pred_region
      %s291 = ssub.s32 %s12, 1
      %p292 = scmp.lt.s32.totalorder %s21, 1
      %s293 = scalar_select %p292, %s21, 1
      %s294 = scalar_lea.vmem %s0, %s293
      %p295 = pneg %p50
      %p296 = pneg %p47
      %s297 = smul.u32 8, %s22
      %p298 = scmp.lt.s32.totalorder %s297, 7
      %s299 = scalar_select %p298, %s297, 7
      %s300 = smul.addr %s299, 8
      %s301 = scalar_lea.vmem %s1, %s300
      %p302 = pneg %p76
      %p303 = pneg %p73
      %s304 = smul.u32 8, %s22
      %p305 = scmp.lt.s32.totalorder %s304, 7
      %s306 = scalar_select %p305, %s304, 7
      %s307 = smul.addr %s306, 8
      %s308 = scalar_lea.vmem %s2, %s307
      %p309 = pneg %p102
      %p310 = pneg %p99
      %s311 = smul.u32 8, %s22
      %p312 = scmp.lt.s32.totalorder %s311, 7
      %s313 = scalar_select %p312, %s311, 7
      %s314 = smul.addr %s313, 8
      %s315 = scalar_lea.vmem %s3, %s314
      %p316 = pneg %p128
      %p317 = pneg %p125
      %s318 = smul.u32 8, %s22
      %p319 = scmp.lt.s32.totalorder %s318, 7
      %s320 = scalar_select %p319, %s318, 7
      %s321 = smul.addr %s320, 8
      %s322 = scalar_lea.vmem %s4, %s321
      %p323 = pneg %p154
      %p324 = pneg %p151
      %s325 = smul.u32 8, %s22
      %p326 = scmp.lt.s32.totalorder %s21, 1
      %s327 = scalar_select %p326, %s21, 1
      %p328 = scmp.lt.s32.totalorder %s325, 7
      %s329 = scalar_select %p328, %s325, 7
      %s330 = smul.addr %s329, 2
      %s331 = smul.addr %s327, 16
      %s332 = sadd.s32 %s330, %s331
      %s333 = smul.addr %s332, 8
      %s334 = scalar_lea.vmem %s5, %s333
      %p335 = pneg %p182
      %p336 = pneg %p179
      %p337 = pneg %p210
      %p338 = pneg %p207
      %s339 = smul.u32 8, %s22
      %p340 = scmp.lt.s32.totalorder %s21, 1
      %s341 = scalar_select %p340, %s21, 1
      %p342 = scmp.lt.s32.totalorder %s339, 7
      %s343 = scalar_select %p342, %s339, 7
      %s344 = smul.addr %s343, 2
      %s345 = smul.addr %s341, 16
      %s346 = sadd.s32 %s344, %s345
      %s347 = smul.addr %s346, 8
      %s348 = scalar_lea.vmem %s6, %s347
      %p349 = scmp.lt.s32.totalorder %s21, 1
      %s350 = scalar_select %p349, %s21, 1
      %s351 = scalar_lea.vmem %s0, %s350
      %s352 = smul.u32 8, %s22
      %p353 = scmp.lt.s32.totalorder %s352, 7
      %s354 = scalar_select %p353, %s352, 7
      %s355 = smul.addr %s354, 8
      %s356 = scalar_lea.vmem %s1, %s355
      %s357 = smul.u32 8, %s22
      %s358 = smul.u32 8, %s22
      %p359 = scmp.lt.s32.totalorder %s358, 7
      %s360 = scalar_select %p359, %s358, 7
      %s361 = smul.addr %s360, 8
      %s362 = scalar_lea.vmem %s2, %s361
      %s363 = smul.u32 8, %s22
      %s364 = smul.u32 8, %s22
      %p365 = scmp.lt.s32.totalorder %s364, 7
      %s366 = scalar_select %p365, %s364, 7
      %s367 = smul.addr %s366, 8
      %s368 = scalar_lea.vmem %s3, %s367
      %s369 = smul.u32 8, %s22
      %s370 = smul.u32 8, %s22
      %p371 = scmp.lt.s32.totalorder %s370, 7
      %s372 = scalar_select %p371, %s370, 7
      %s373 = smul.addr %s372, 8
      %s374 = scalar_lea.vmem %s4, %s373
      %s375 = smul.u32 8, %s22
      %s376 = smul.u32 8, %s22
      %p377 = scmp.lt.s32.totalorder %s21, 1
      %s378 = scalar_select %p377, %s21, 1
      %p379 = scmp.lt.s32.totalorder %s376, 7
      %s380 = scalar_select %p379, %s376, 7
      %s381 = smul.addr %s380, 2
      %s382 = smul.addr %s378, 16
      %s383 = sadd.s32 %s381, %s382
      %s384 = smul.addr %s383, 8
      %s385 = scalar_lea.vmem %s5, %s384
      %s386 = smul.u32 8, %s22
      %s387 = smul.u32 8, %s22
      %p388 = scmp.lt.s32.totalorder %s21, 1
      %s389 = scalar_select %p388, %s21, 1
      %p390 = scmp.lt.s32.totalorder %s387, 7
      %s391 = scalar_select %p390, %s387, 7
      %s392 = smul.addr %s391, 2
      %s393 = smul.addr %s389, 16
      %s394 = sadd.s32 %s392, %s393
      %s395 = smul.addr %s394, 8
      %s396 = scalar_lea.vmem %s6, %s395
      %s397 = smul.u32 8, %s22
      %v398 = vld [vmem:[%s351] sm:$0x1]
      %v399 = vld [vmem:[%s356] sm:$0xff]
      %v400 = vld [vmem:[%s356 + $0x8] sm:$0xff]
      %v401 = vld [vmem:[%s356 + $0x10] sm:$0xff]
      %v402 = vld [vmem:[%s356 + $0x18] sm:$0xff]
      %v403 = vld [vmem:[%s356 + $0x20] sm:$0xff]
      %v404 = vld [vmem:[%s356 + $0x28] sm:$0xff]
      %v405 = vld [vmem:[%s356 + $0x30] sm:$0xff]
      %v406 = vld [vmem:[%s356 + $0x38] sm:$0xff]
      %v408 = vlaneseq
      %v409 = vshrl.u32 %v408, 7
      %v410 = vsub.s32 0, %v409
      %v411 = vrot.slane %v398, %v410
      %v413 = vmul.f32 %v399, %v411
      %v414 = vmul.f32 %v400, %v411
      %v415 = vmul.f32 %v401, %v411
      %v416 = vmul.f32 %v402, %v411
      %v417 = vmul.f32 %v403, %v411
      %v418 = vmul.f32 %v404, %v411
      %v419 = vmul.f32 %v405, %v411
      %v420 = vmul.f32 %v406, %v411
      %vm421 = vcmask 523264
      %v422 = vsel %vm421, %v413, 0.0
      %423 = vadd.xlane.f32.xlu0 %v422
      %v424 = vpop.xlane.xlu0 %423
      %v425 = vsel %vm421, %v414, 0.0
      %426 = vadd.xlane.f32.xlu0 %v425
      %v427 = vpop.xlane.xlu0 %426
      %v428 = vsel %vm421, %v415, 0.0
      %429 = vadd.xlane.f32.xlu0 %v428
      %v430 = vpop.xlane.xlu0 %429
      %v431 = vsel %vm421, %v416, 0.0
      %432 = vadd.xlane.f32.xlu0 %v431
      %v433 = vpop.xlane.xlu0 %432
      %v434 = vsel %vm421, %v417, 0.0
      %435 = vadd.xlane.f32.xlu0 %v434
      %v436 = vpop.xlane.xlu0 %435
      %v437 = vsel %vm421, %v418, 0.0
      %438 = vadd.xlane.f32.xlu0 %v437
      %v439 = vpop.xlane.xlu0 %438
      %v440 = vsel %vm421, %v419, 0.0
      %441 = vadd.xlane.f32.xlu0 %v440
      %v442 = vpop.xlane.xlu0 %441
      %v443 = vsel %vm421, %v420, 0.0
      %444 = vadd.xlane.f32.xlu0 %v443
      %v445 = vpop.xlane.xlu0 %444
      %v446 = vld [vmem:[%s368] sm:$0xff]
      %v447 = vld [vmem:[%s368 + $0x8] sm:$0xff]
      %v448 = vld [vmem:[%s368 + $0x10] sm:$0xff]
      %v449 = vld [vmem:[%s368 + $0x18] sm:$0xff]
      %v450 = vld [vmem:[%s368 + $0x20] sm:$0xff]
      %v451 = vld [vmem:[%s368 + $0x28] sm:$0xff]
      %v452 = vld [vmem:[%s368 + $0x30] sm:$0xff]
      %v453 = vld [vmem:[%s368 + $0x38] sm:$0xff]
      %v454 = vadd.f32 %v424, %v446
      %v455 = vadd.f32 %v427, %v447
      %v456 = vadd.f32 %v430, %v448
      %v457 = vadd.f32 %v433, %v449
      %v458 = vadd.f32 %v436, %v450
      %v459 = vadd.f32 %v439, %v451
      %v460 = vadd.f32 %v442, %v452
      %v461 = vadd.f32 %v445, %v453
      %v462 = vld [vmem:[%s362] sm:$0xff]
      %v463 = vld [vmem:[%s362 + $0x8] sm:$0xff]
      %v464 = vld [vmem:[%s362 + $0x10] sm:$0xff]
      %v465 = vld [vmem:[%s362 + $0x18] sm:$0xff]
      %v466 = vld [vmem:[%s362 + $0x20] sm:$0xff]
      %v467 = vld [vmem:[%s362 + $0x28] sm:$0xff]
      %v468 = vld [vmem:[%s362 + $0x30] sm:$0xff]
      %v469 = vld [vmem:[%s362 + $0x38] sm:$0xff]
      %v470 = vmul.f32 %v462, %v411
      %v471 = vmul.f32 %v463, %v411
      %v472 = vmul.f32 %v464, %v411
      %v473 = vmul.f32 %v465, %v411
      %v474 = vmul.f32 %v466, %v411
      %v475 = vmul.f32 %v467, %v411
      %v476 = vmul.f32 %v468, %v411
      %v477 = vmul.f32 %v469, %v411
      %v478 = vsel %vm421, %v470, 0.0
      %479 = vadd.xlane.f32.xlu0 %v478
      %v480 = vpop.xlane.xlu0 %479
      %v481 = vsel %vm421, %v471, 0.0
      %482 = vadd.xlane.f32.xlu0 %v481
      %v483 = vpop.xlane.xlu0 %482
      %v484 = vsel %vm421, %v472, 0.0
      %485 = vadd.xlane.f32.xlu0 %v484
      %v486 = vpop.xlane.xlu0 %485
      %v487 = vsel %vm421, %v473, 0.0
      %488 = vadd.xlane.f32.xlu0 %v487
      %v489 = vpop.xlane.xlu0 %488
      %v490 = vsel %vm421, %v474, 0.0
      %491 = vadd.xlane.f32.xlu0 %v490
      %v492 = vpop.xlane.xlu0 %491
      %v493 = vsel %vm421, %v475, 0.0
      %494 = vadd.xlane.f32.xlu0 %v493
      %v495 = vpop.xlane.xlu0 %494
      %v496 = vsel %vm421, %v476, 0.0
      %497 = vadd.xlane.f32.xlu0 %v496
      %v498 = vpop.xlane.xlu0 %497
      %v499 = vsel %vm421, %v477, 0.0
      %500 = vadd.xlane.f32.xlu0 %v499
      %v501 = vpop.xlane.xlu0 %500
      %v502 = vld [vmem:[%s374] sm:$0xff]
      %v503 = vld [vmem:[%s374 + $0x8] sm:$0xff]
      %v504 = vld [vmem:[%s374 + $0x10] sm:$0xff]
      %v505 = vld [vmem:[%s374 + $0x18] sm:$0xff]
      %v506 = vld [vmem:[%s374 + $0x20] sm:$0xff]
      %v507 = vld [vmem:[%s374 + $0x28] sm:$0xff]
      %v508 = vld [vmem:[%s374 + $0x30] sm:$0xff]
      %v509 = vld [vmem:[%s374 + $0x38] sm:$0xff]
      %v510 = vadd.f32 %v480, %v502
      %v511 = vadd.f32 %v483, %v503
      %v512 = vadd.f32 %v486, %v504
      %v513 = vadd.f32 %v489, %v505
      %v514 = vadd.f32 %v492, %v506
      %v515 = vadd.f32 %v495, %v507
      %v516 = vadd.f32 %v498, %v508
      %v517 = vadd.f32 %v501, %v509
      %v518 = vld [vmem:[%s385] sm:$0xff]
      %v519 = vld [vmem:[%s385 + $0x8] sm:$0xff]
      %v520 = vld [vmem:[%s385 + $0x10] sm:$0xff]
      %v521 = vld [vmem:[%s385 + $0x18] sm:$0xff]
      %v522 = vld [vmem:[%s385 + $0x20] sm:$0xff]
      %v523 = vld [vmem:[%s385 + $0x28] sm:$0xff]
      %v524 = vld [vmem:[%s385 + $0x30] sm:$0xff]
      %v525 = vld [vmem:[%s385 + $0x38] sm:$0xff]
      %v526 = vld [vmem:[%s385 + $0x40] sm:$0xff]
      %v527 = vld [vmem:[%s385 + $0x48] sm:$0xff]
      %v528 = vld [vmem:[%s385 + $0x50] sm:$0xff]
      %v529 = vld [vmem:[%s385 + $0x58] sm:$0xff]
      %v530 = vld [vmem:[%s385 + $0x60] sm:$0xff]
      %v531 = vld [vmem:[%s385 + $0x68] sm:$0xff]
      %v532 = vld [vmem:[%s385 + $0x70] sm:$0xff]
      %v533 = vld [vmem:[%s385 + $0x78] sm:$0xff]
      %v534 = vadd.f32 %v518, %v519
      %535 = vadd.xlane.f32.xlu0 %v534
      %v536 = vpop.xlane.xlu0 %535
      %v537 = vadd.f32 %v520, %v521
      %538 = vadd.xlane.f32.xlu0 %v537
      %v539 = vpop.xlane.xlu0 %538
      %v540 = vadd.f32 %v522, %v523
      %541 = vadd.xlane.f32.xlu0 %v540
      %v542 = vpop.xlane.xlu0 %541
      %v543 = vadd.f32 %v524, %v525
      %544 = vadd.xlane.f32.xlu0 %v543
      %v545 = vpop.xlane.xlu0 %544
      %v546 = vadd.f32 %v526, %v527
      %547 = vadd.xlane.f32.xlu0 %v546
      %v548 = vpop.xlane.xlu0 %547
      %v549 = vadd.f32 %v528, %v529
      %550 = vadd.xlane.f32.xlu0 %v549
      %v551 = vpop.xlane.xlu0 %550
      %v552 = vadd.f32 %v530, %v531
      %553 = vadd.xlane.f32.xlu0 %v552
      %v554 = vpop.xlane.xlu0 %553
      %v555 = vadd.f32 %v532, %v533
      %556 = vadd.xlane.f32.xlu0 %v555
      %v557 = vpop.xlane.xlu0 %556
      %v558 = vrcp.pop 256.0
      %v559 = vmul.f32 %v536, %v558
      %v560 = vmul.f32 %v539, %v558
      %v561 = vmul.f32 %v542, %v558
      %v562 = vmul.f32 %v545, %v558
      %v563 = vmul.f32 %v548, %v558
      %v564 = vmul.f32 %v551, %v558
      %v565 = vmul.f32 %v554, %v558
      %v566 = vmul.f32 %v557, %v558
      %v567 = vsub.f32 %v518, %v559
      %v568 = vsub.f32 %v519, %v559
      %v569 = vsub.f32 %v520, %v560
      %v570 = vsub.f32 %v521, %v560
      %v571 = vsub.f32 %v522, %v561
      %v572 = vsub.f32 %v523, %v561
      %v573 = vsub.f32 %v524, %v562
      %v574 = vsub.f32 %v525, %v562
      %v575 = vsub.f32 %v526, %v563
      %v576 = vsub.f32 %v527, %v563
      %v577 = vsub.f32 %v528, %v564
      %v578 = vsub.f32 %v529, %v564
      %v579 = vsub.f32 %v530, %v565
      %v580 = vsub.f32 %v531, %v565
      %v581 = vsub.f32 %v532, %v566
      %v582 = vsub.f32 %v533, %v566
      %v583 = vmul.f32 %v567, %v567
      %v584 = vmul.f32 %v568, %v568
      %v585 = vmul.f32 %v569, %v569
      %v586 = vmul.f32 %v570, %v570
      %v587 = vmul.f32 %v571, %v571
      %v588 = vmul.f32 %v572, %v572
      %v589 = vmul.f32 %v573, %v573
      %v590 = vmul.f32 %v574, %v574
      %v591 = vmul.f32 %v575, %v575
      %v592 = vmul.f32 %v576, %v576
      %v593 = vmul.f32 %v577, %v577
      %v594 = vmul.f32 %v578, %v578
      %v595 = vmul.f32 %v579, %v579
      %v596 = vmul.f32 %v580, %v580
      %v597 = vmul.f32 %v581, %v581
      %v598 = vmul.f32 %v582, %v582
      %v599 = vadd.f32 %v583, %v584
      %600 = vadd.xlane.f32.xlu0 %v599
      %v601 = vpop.xlane.xlu0 %600
      %v602 = vadd.f32 %v585, %v586
      %603 = vadd.xlane.f32.xlu0 %v602
      %v604 = vpop.xlane.xlu0 %603
      %v605 = vadd.f32 %v587, %v588
      %606 = vadd.xlane.f32.xlu0 %v605
      %v607 = vpop.xlane.xlu0 %606
      %v608 = vadd.f32 %v589, %v590
      %609 = vadd.xlane.f32.xlu0 %v608
      %v610 = vpop.xlane.xlu0 %609
      %v611 = vadd.f32 %v591, %v592
      %612 = vadd.xlane.f32.xlu0 %v611
      %v613 = vpop.xlane.xlu0 %612
      %v614 = vadd.f32 %v593, %v594
      %615 = vadd.xlane.f32.xlu0 %v614
      %v616 = vpop.xlane.xlu0 %615
      %v617 = vadd.f32 %v595, %v596
      %618 = vadd.xlane.f32.xlu0 %v617
      %v619 = vpop.xlane.xlu0 %618
      %v620 = vadd.f32 %v597, %v598
      %621 = vadd.xlane.f32.xlu0 %v620
      %v622 = vpop.xlane.xlu0 %621
      %v623 = vmul.f32 %v601, %v558
      %v624 = vmul.f32 %v604, %v558
      %v625 = vmul.f32 %v607, %v558
      %v626 = vmul.f32 %v610, %v558
      %v627 = vmul.f32 %v613, %v558
      %v628 = vmul.f32 %v616, %v558
      %v629 = vmul.f32 %v619, %v558
      %v630 = vmul.f32 %v622, %v558
      %v631 = vadd.f32 %v623, 1e-05
      %v632 = vadd.f32 %v624, 1e-05
      %v633 = vadd.f32 %v625, 1e-05
      %v634 = vadd.f32 %v626, 1e-05
      %v635 = vadd.f32 %v627, 1e-05
      %v636 = vadd.f32 %v628, 1e-05
      %v637 = vadd.f32 %v629, 1e-05
      %v638 = vadd.f32 %v630, 1e-05
      %v639 = vrsqrt.pop %v631
      %v640 = vrsqrt.pop %v632
      %v641 = vrsqrt.pop %v633
      %v642 = vrsqrt.pop %v634
      %v643 = vrsqrt.pop %v635
      %v644 = vrsqrt.pop %v636
      %v645 = vrsqrt.pop %v637
      %v646 = vrsqrt.pop %v638
      %v647 = vmul.f32 %v567, %v639
      %v648 = vmul.f32 %v568, %v639
      %v649 = vmul.f32 %v569, %v640
      %v650 = vmul.f32 %v570, %v640
      %v651 = vmul.f32 %v571, %v641
      %v652 = vmul.f32 %v572, %v641
      %v653 = vmul.f32 %v573, %v642
      %v654 = vmul.f32 %v574, %v642
      %v655 = vmul.f32 %v575, %v643
      %v656 = vmul.f32 %v576, %v643
      %v657 = vmul.f32 %v577, %v644
      %v658 = vmul.f32 %v578, %v644
      %v659 = vmul.f32 %v579, %v645
      %v660 = vmul.f32 %v580, %v645
      %v661 = vmul.f32 %v581, %v646
      %v662 = vmul.f32 %v582, %v646
      %v663 = vadd.f32 %v454, 1.0
      %v664 = vadd.f32 %v455, 1.0
      %v665 = vadd.f32 %v456, 1.0
      %v666 = vadd.f32 %v457, 1.0
      %v667 = vadd.f32 %v458, 1.0
      %v668 = vadd.f32 %v459, 1.0
      %v669 = vadd.f32 %v460, 1.0
      %v670 = vadd.f32 %v461, 1.0
      %672 = vset.pattern.permute.xlu0 0
      %673 = vperm.xlu0 %672, %v663
      %v674 = vpop.permute.xlu0 %673
      %677 = vset.pattern.permute.xlu0 0
      %678 = vperm.xlu0 %677, %v664
      %v679 = vpop.permute.xlu0 %678
      %682 = vset.pattern.permute.xlu0 0
      %683 = vperm.xlu0 %682, %v665
      %v684 = vpop.permute.xlu0 %683
      %687 = vset.pattern.permute.xlu0 0
      %688 = vperm.xlu0 %687, %v666
      %v689 = vpop.permute.xlu0 %688
      %692 = vset.pattern.permute.xlu0 0
      %693 = vperm.xlu0 %692, %v667
      %v694 = vpop.permute.xlu0 %693
      %697 = vset.pattern.permute.xlu0 0
      %698 = vperm.xlu0 %697, %v668
      %v699 = vpop.permute.xlu0 %698
      %702 = vset.pattern.permute.xlu0 0
      %703 = vperm.xlu0 %702, %v669
      %v704 = vpop.permute.xlu0 %703
      %707 = vset.pattern.permute.xlu0 0
      %708 = vperm.xlu0 %707, %v670
      %v709 = vpop.permute.xlu0 %708
      %v711 = vmul.f32 %v674, %v647
      %v712 = vmul.f32 %v674, %v648
      %v713 = vmul.f32 %v679, %v649
      %v714 = vmul.f32 %v679, %v650
      %v715 = vmul.f32 %v684, %v651
      %v716 = vmul.f32 %v684, %v652
      %v717 = vmul.f32 %v689, %v653
      %v718 = vmul.f32 %v689, %v654
      %v719 = vmul.f32 %v694, %v655
      %v720 = vmul.f32 %v694, %v656
      %v721 = vmul.f32 %v699, %v657
      %v722 = vmul.f32 %v699, %v658
      %v723 = vmul.f32 %v704, %v659
      %v724 = vmul.f32 %v704, %v660
      %v725 = vmul.f32 %v709, %v661
      %v726 = vmul.f32 %v709, %v662
      %728 = vset.pattern.permute.xlu0 0
      %729 = vperm.xlu0 %728, %v510
      %v730 = vpop.permute.xlu0 %729
      %733 = vset.pattern.permute.xlu0 0
      %734 = vperm.xlu0 %733, %v511
      %v735 = vpop.permute.xlu0 %734
      %738 = vset.pattern.permute.xlu0 0
      %739 = vperm.xlu0 %738, %v512
      %v740 = vpop.permute.xlu0 %739
      %743 = vset.pattern.permute.xlu0 0
      %744 = vperm.xlu0 %743, %v513
      %v745 = vpop.permute.xlu0 %744
      %748 = vset.pattern.permute.xlu0 0
      %749 = vperm.xlu0 %748, %v514
      %v750 = vpop.permute.xlu0 %749
      %753 = vset.pattern.permute.xlu0 0
      %754 = vperm.xlu0 %753, %v515
      %v755 = vpop.permute.xlu0 %754
      %758 = vset.pattern.permute.xlu0 0
      %759 = vperm.xlu0 %758, %v516
      %v760 = vpop.permute.xlu0 %759
      %763 = vset.pattern.permute.xlu0 0
      %764 = vperm.xlu0 %763, %v517
      %v765 = vpop.permute.xlu0 %764
      %v767 = vadd.f32 %v711, %v730
      %v768 = vadd.f32 %v712, %v730
      %v769 = vadd.f32 %v713, %v735
      %v770 = vadd.f32 %v714, %v735
      %v771 = vadd.f32 %v715, %v740
      %v772 = vadd.f32 %v716, %v740
      %v773 = vadd.f32 %v717, %v745
      %v774 = vadd.f32 %v718, %v745
      %v775 = vadd.f32 %v719, %v750
      %v776 = vadd.f32 %v720, %v750
      %v777 = vadd.f32 %v721, %v755
      %v778 = vadd.f32 %v722, %v755
      %v779 = vadd.f32 %v723, %v760
      %v780 = vadd.f32 %v724, %v760
      %v781 = vadd.f32 %v725, %v765
      %v782 = vadd.f32 %v726, %v765
      %783 = vst [vmem:[%s396] sm:$0xff] %v767
      %784 = vst [vmem:[%s396 + $0x8] sm:$0xff] %v768
      %785 = vst [vmem:[%s396 + $0x10] sm:$0xff] %v769
      %786 = vst [vmem:[%s396 + $0x18] sm:$0xff] %v770
      %787 = vst [vmem:[%s396 + $0x20] sm:$0xff] %v771
      %788 = vst [vmem:[%s396 + $0x28] sm:$0xff] %v772
      %789 = vst [vmem:[%s396 + $0x30] sm:$0xff] %v773
      %790 = vst [vmem:[%s396 + $0x38] sm:$0xff] %v774
      %791 = vst [vmem:[%s396 + $0x40] sm:$0xff] %v775
      %792 = vst [vmem:[%s396 + $0x48] sm:$0xff] %v776
      %793 = vst [vmem:[%s396 + $0x50] sm:$0xff] %v777
      %794 = vst [vmem:[%s396 + $0x58] sm:$0xff] %v778
      %795 = vst [vmem:[%s396 + $0x60] sm:$0xff] %v779
      %796 = vst [vmem:[%s396 + $0x68] sm:$0xff] %v780
      %797 = vst [vmem:[%s396 + $0x70] sm:$0xff] %v781
      %798 = vst [vmem:[%s396 + $0x78] sm:$0xff] %v782
      %s799 = smul.u32 8, %s22
      %p800 = scmp.lt.s32.totalorder %s21, 1
      %s801 = scalar_select %p800, %s21, 1
      %p802 = scmp.lt.s32.totalorder %s799, 7
      %s803 = scalar_select %p802, %s799, 7
      %s804 = smul.addr %s803, 2
      %s805 = smul.addr %s801, 16
      %s806 = sadd.s32 %s804, %s805
      %s807 = smul.addr %s806, 8
      %s808 = scalar_lea.vmem %s6, %s807
      // Predicated region
      $region45: #{adain_forward.1} parent=43 // pred_check
        %p809 = pneg %p207
      $region46: #{adain_forward.1} parent=43 // pred_check_branch
        %811 = sbr.rel (%p809) target = $region48
      $region47: #{adain_forward.1} parent=43 // pred_region
        %s812 = smul.u32 8, %s22
      $region48: #{adain_forward.1} parent=43 // pred_fallthru
        _
    $region44: #{adain_forward.1} parent=5 // pred_fallthru
      _
    %p813 = scmp.le.s32.totalorder 2, %s12
    // Predicated region
    $region49: #{adain_forward.1} parent=5 // pred_check
      %p814 = pneg %p813
    $region50: #{adain_forward.1} parent=5 // pred_check_branch
      %816 = sbr.rel (%p814) target = $region52
    $region51: #{adain_forward.1} parent=5 // pred_region
      %s817 = ssub.s32 %s12, 2
      // Predicated region
      $region53: #{adain_forward.1} parent=51 // pred_check
        %p818 = pneg %p213
      $region54: #{adain_forward.1} parent=51 // pred_check_branch
        %820 = sbr.rel (%p818) target = $region56
      $region55: #{adain_forward.1} parent=51 // pred_region
        %s821 = smul.u32 8, %s24
        %p822 = scmp.lt.s32.totalorder %s23, 1
        %s823 = scalar_select %p822, %s23, 1
        %p824 = scmp.lt.s32.totalorder %s821, 7
        %s825 = scalar_select %p824, %s821, 7
        %s826 = smul.addr %s825, 2
        %s827 = smul.addr %s823, 16
        %s828 = sadd.s32 %s826, %s827
        %s829 = smul.addr %s828, 8
        %s830 = scalar_lea.vmem %s6, %s829
      $region56: #{adain_forward.1} parent=51 // pred_fallthru
        _
    $region52: #{adain_forward.1} parent=5 // pred_fallthru
      _
  $region6: #{adain_forward.1} parent=0 // loop_footer
    %s16 = sadd.s32 1, %s12
  $region7: #{adain_forward.1} parent=0 // loop_footer_branch
    %11 = sbr.rel target = $region3
  $region8: #{adain_forward.1} parent=0 // loop_exit
    _

</llo_original>
